<compile_context>
chip_gen: v7x
topology: tpu7x:2x2x1
jax: 0.10.0
libtpu: 0.0.40
codegen_flags: <defaults>
</compile_context>

<pallas_src>
import functools

import jax
import jax.numpy as jnp
import numpy as np
from jax.experimental import pallas as pl
from jax.experimental.pallas import tpu as pltpu


def _round_up(x, m):
    return (x + m - 1) // m * m


# ----------------------------------------------------------------------------- kernel
def _lstm_cell_kernel(xh_ref, w_ref, b_ref, c_ref, mask_ref,
                      h_out_ref, c_out_ref, *, tn):
    # One fused MXU matmul: [x | h] @ [Wih ; Whh] -> (bs, 4*tn) gate pre-activations.
    gates = jnp.dot(xh_ref[...], w_ref[...], preferred_element_type=jnp.float32)
    gates = gates + b_ref[...]

    # Gate layout inside this tile: [i | f | g | o], each `tn` wide (tn % 128 == 0),
    # so all slices below are lane-aligned.
    i_g = jax.nn.sigmoid(gates[:, 0 * tn:1 * tn])
    f_g = jax.nn.sigmoid(gates[:, 1 * tn:2 * tn])
    g_g = jnp.tanh(gates[:, 2 * tn:3 * tn])
    o_g = jax.nn.sigmoid(gates[:, 3 * tn:4 * tn])

    c_new = f_g * c_ref[...] + i_g * g_g                    # f32
    h_new = o_g * jnp.tanh(c_new) * mask_ref[...]           # mask folds the 1/(1-p) scale

    h_out_ref[...] = h_new.astype(h_out_ref.dtype)
    c_out_ref[...] = c_new.astype(c_out_ref.dtype)


# --------------------------------------------------------------------- param prep (once)
def prepare_lstm_params(w_ih, w_hh, b_ih, b_hh, *, compute_dtype=jnp.bfloat16):
    """Pre-stack / pre-transpose the LSTMCell weights. Call ONCE, reuse every step."""
    four_h, D = w_ih.shape
    H = four_h // 4
    Hp = _round_up(max(H, 128), 128)          # lane-aligned hidden size
    Dp = _round_up(D, 16)                     # sublane-friendly input pad
    tn = next(c for c in (512, 256, 128) if Hp % c == 0)   # hidden tile (multiple of 128)
    nb = Hp // tn
    K = Dp + Hp

    # (4H, D)/(4H, H) -> (D, 4, H)/(H, 4, H) with gate axis explicit.
    w_ih_g = jnp.transpose(w_ih.reshape(4, H, D), (2, 0, 1)).astype(jnp.float32)
    w_hh_g = jnp.transpose(w_hh.reshape(4, H, H), (2, 0, 1)).astype(jnp.float32)

    w_x = jnp.zeros((Dp, 4, Hp), jnp.float32).at[:D, :, :H].set(w_ih_g)
    w_h = jnp.zeros((Hp, 4, Hp), jnp.float32).at[:H, :, :H].set(w_hh_g)
    w = jnp.concatenate([w_x, w_h], axis=0)                        # (K, 4, Hp)
    # Block-interleave gates so each hidden tile j holds [i_j | f_j | g_j | o_j].
    w = w.reshape(K, 4, nb, tn).transpose(0, 2, 1, 3).reshape(K, 4 * Hp)

    b = (b_ih + b_hh).astype(jnp.float32).reshape(4, H)
    b = jnp.zeros((4, Hp), jnp.float32).at[:, :H].set(b)
    b = b.reshape(4, nb, tn).transpose(1, 0, 2).reshape(1, 4 * Hp)

    return dict(w=w.astype(compute_dtype), b=b,
                D=D, H=H, Dp=Dp, Hp=Hp, tn=tn, nb=nb, K=K,
                compute_dtype=compute_dtype)


def _make_dropout_mask(key, p, bs, hp):
    keep = jax.random.bernoulli(key, 1.0 - p, (bs, hp))
    return keep.astype(jnp.float32) * jnp.float32(1.0 / (1.0 - p))


# ----------------------------------------------------------------------------- wrapper
def dropout_lstm_cell(x, hidden, prepared, *, dropout_p, rng_key=None, training=True):
    """x: (bs, input_dim); hidden: optional (h, c) each (bs, hidden_dim)."""
    bs, D = x.shape
    H, Hp, Dp, tn, nb, K = (prepared[k] for k in ("H", "Hp", "Dp", "tn", "nb", "K"))
    cdt = prepared["compute_dtype"]

    if hidden is None:
        h0 = jnp.zeros((bs, H), jnp.float32)
        c0 = jnp.zeros((bs, H), jnp.float32)
    else:
        h0, c0 = hidden

    # Fused, padded activation [x | h]  (zero padding matches zero weight rows).
    xh = jnp.zeros((bs, K), cdt)
    xh = xh.at[:, :D].set(x.astype(cdt))
    xh = xh.at[:, Dp:Dp + H].set(h0.astype(cdt))

    c0p = jnp.zeros((bs, Hp), jnp.float32).at[:, :H].set(c0.astype(jnp.float32))

    if training and dropout_p > 0.0:
        mask = _make_dropout_mask(rng_key, dropout_p, bs, Hp)
    else:
        mask = jnp.ones((bs, Hp), jnp.float32)

    kernel = functools.partial(_lstm_cell_kernel, tn=tn)

    h_out, c_out = pl.pallas_call(
        kernel,
        grid=(nb,),
        in_specs=[
            pl.BlockSpec((bs, K), lambda j: (0, 0)),          # [x|h], reused every tile
            pl.BlockSpec((K, 4 * tn), lambda j: (0, j)),      # streamed weight tile
            pl.BlockSpec((1, 4 * tn), lambda j: (0, j)),      # bias tile
            pl.BlockSpec((bs, tn), lambda j: (0, j)),         # c0 tile
            pl.BlockSpec((bs, tn), lambda j: (0, j)),         # dropout mask tile
        ],
        out_specs=(pl.BlockSpec((bs, tn), lambda j: (0, j)),
                   pl.BlockSpec((bs, tn), lambda j: (0, j))),
        out_shape=(jax.ShapeDtypeStruct((bs, Hp), x.dtype),
                   jax.ShapeDtypeStruct((bs, Hp), x.dtype)),
        compiler_params=pltpu.CompilerParams(dimension_semantics=("parallel",)),
    )(xh, prepared["w"], prepared["b"], c0p, mask)

    return h_out[:, :H], c_out[:, :H]


# --------------------------------------------------------------------------- reference
def _init_params(key, input_dim, hidden_dim, dtype=jnp.float32):
    """PyTorch-style uniform(-1/sqrt(H), 1/sqrt(H)) init."""
    k1, k2, k3, k4 = jax.random.split(key, 4)
    bound = 1.0 / np.sqrt(hidden_dim)
    w_ih = jax.random.uniform(k1, (4 * hidden_dim, input_dim), dtype, -bound, bound)
    w_hh = jax.random.uniform(k2, (4 * hidden_dim, hidden_dim), dtype, -bound, bound)
    b_ih = jax.random.uniform(k3, (4 * hidden_dim,), dtype, -bound, bound)
    b_hh = jax.random.uniform(k4, (4 * hidden_dim,), dtype, -bound, bound)
    return w_ih, w_hh, b_ih, b_hh


def _reference_no_dropout(x, hidden, params):
    w_ih, w_hh, b_ih, b_hh = params
    h0, c0 = hidden
    gates = x @ w_ih.T + b_ih + h0 @ w_hh.T + b_hh
    H = h0.shape[1]
    i = jax.nn.sigmoid(gates[:, 0 * H:1 * H])
    f = jax.nn.sigmoid(gates[:, 1 * H:2 * H])
    g = jnp.tanh(gates[:, 2 * H:3 * H])
    o = jax.nn.sigmoid(gates[:, 3 * H:4 * H])
    c = f * c0 + i * g
    h = o * jnp.tanh(c)
    return h, c


if __name__ == "__main__":
    batch, input_dim, hidden_dim = 8, 32, 32
    dropout_p = 0.1

    key = jax.random.PRNGKey(0)
    kx, kh, kc, kp, kd = jax.random.split(key, 5)
    x = jax.random.normal(kx, (batch, input_dim), jnp.float32)
    h0 = jax.random.normal(kh, (batch, hidden_dim), jnp.float32)
    c0 = jax.random.normal(kc, (batch, hidden_dim), jnp.float32)
    params = _init_params(kp, input_dim, hidden_dim)

    # f32 compute path: tight-ish validation (tolerance covers MXU f32 pass decomposition).
    prep_f32 = prepare_lstm_params(*params, compute_dtype=jnp.float32)
    h_out, c_out = dropout_lstm_cell(x, (h0, c0), prep_f32,
                                     dropout_p=dropout_p, rng_key=kd, training=True)
    jax.block_until_ready((h_out, c_out))

    h_ref, c_ref = _reference_no_dropout(x, (h0, c0), params)
    mask_ref = _make_dropout_mask(kd, dropout_p, batch, prep_f32["Hp"])[:, :hidden_dim]
    np.testing.assert_allclose(np.asarray(c_out), np.asarray(c_ref), rtol=2e-2, atol=2e-2)
    np.testing.assert_allclose(np.asarray(h_out), np.asarray(h_ref * mask_ref),
                               rtol=2e-2, atol=2e-2)

    # eval-mode path (dropout is identity).
    h_nd, c_nd = dropout_lstm_cell(x, (h0, c0), prep_f32,
                                   dropout_p=dropout_p, rng_key=kd, training=False)
    jax.block_until_ready((h_nd, c_nd))
    np.testing.assert_allclose(np.asarray(h_nd), np.asarray(h_ref), rtol=2e-2, atol=2e-2)

    # bf16 weight/activation streaming path (recommended default on v5e/v6e/v7x).
    prep_bf16 = prepare_lstm_params(*params, compute_dtype=jnp.bfloat16)
    h_bf, c_bf = dropout_lstm_cell(x, (h0, c0), prep_bf16,
                                   dropout_p=dropout_p, rng_key=kd, training=False)
    jax.block_until_ready((h_bf, c_bf))
    np.testing.assert_allclose(np.asarray(c_bf), np.asarray(c_ref), rtol=1e-1, atol=1e-1)

    assert h_out.shape == (batch, hidden_dim) and c_out.shape == (batch, hidden_dim)
    assert bool(jnp.all(jnp.isfinite(h_out))) and bool(jnp.all(jnp.isfinite(c_out)))
    print("KERNEL_OK")
</pallas_src>

<mosaic_0001>
module attributes {stable_mosaic.version = 11 : i64} {
  func.func @_lstm_cell_kernel(%arg0: i32, %arg1: memref<8x160xf32, #tpu.memory_space<vmem>>, %arg2: memref<160x512xf32, #tpu.memory_space<vmem>>, %arg3: memref<1x512xf32, #tpu.memory_space<vmem>>, %arg4: memref<8x128xf32, #tpu.memory_space<vmem>>, %arg5: memref<8x128xf32, #tpu.memory_space<vmem>>, %arg6: memref<8x128xf32, #tpu.memory_space<vmem>>, %arg7: memref<8x128xf32, #tpu.memory_space<vmem>>) attributes {dimension_semantics = [#tpu.dimension_semantics<parallel>], iteration_bounds = array<i64: 1>, scalar_prefetch = 0 : i64, scratch_operands = 0 : i64, tpu.core_type = #tpu.core_type<tc>, window_params = [{pipeline_mode = #tpu.pipeline_mode<synchronous>, transform_indices = @transform_0, window_bounds = array<i64: 8, 160>}, {transform_indices = @transform_1, window_bounds = array<i64: 160, 512>}, {transform_indices = @transform_2, window_bounds = array<i64: 1, 512>}, {transform_indices = @transform_3, window_bounds = array<i64: 8, 128>}, {transform_indices = @transform_4, window_bounds = array<i64: 8, 128>}, {transform_indices = @transform_5, window_bounds = array<i64: 8, 128>}, {transform_indices = @transform_6, window_bounds = array<i64: 8, 128>}]} {
    %c0 = arith.constant 0 : index
    %c0_0 = arith.constant 0 : index
    %0 = vector.load %arg1[%c0, %c0_0] : memref<8x160xf32, #tpu.memory_space<vmem>>, vector<8x160xf32>
    %c0_1 = arith.constant 0 : index
    %c0_2 = arith.constant 0 : index
    %1 = vector.load %arg2[%c0_1, %c0_2] : memref<160x512xf32, #tpu.memory_space<vmem>>, vector<160x512xf32>
    %cst = arith.constant dense<0.000000e+00> : vector<8x512xf32>
    %2 = tpu.matmul %0, %1, %cst {dimension_numbers = #tpu.dot_dimension_numbers<[1], [0], [0], [1], [0, 0, 1, 1], [], []>} : vector<8x160xf32>, vector<160x512xf32>, vector<8x512xf32> -> vector<8x512xf32>
    %c0_3 = arith.constant 0 : index
    %c0_4 = arith.constant 0 : index
    %3 = vector.load %arg3[%c0_3, %c0_4] : memref<1x512xf32, #tpu.memory_space<vmem>>, vector<1x512xf32>
    %4 = vector.broadcast %3 : vector<1x512xf32> to vector<8x512xf32>
    %5 = arith.addf %2, %4 : vector<8x512xf32>
    %6 = vector.extract_strided_slice %5 {offsets = [0, 0], sizes = [8, 128], strides = [1, 1]} : vector<8x512xf32> to vector<8x128xf32>
    %7 = arith.negf %6 : vector<8x128xf32>
    %8 = math.exp %7 : vector<8x128xf32>
    %cst_5 = arith.constant 1.000000e+00 : f32
    %9 = vector.broadcast %cst_5 : f32 to vector<8x128xf32>
    %10 = arith.addf %9, %8 : vector<8x128xf32>
    %11 = arith.divf %9, %10 : vector<8x128xf32>
    %12 = vector.extract_strided_slice %5 {offsets = [0, 128], sizes = [8, 128], strides = [1, 1]} : vector<8x512xf32> to vector<8x128xf32>
    %13 = arith.negf %12 : vector<8x128xf32>
    %14 = math.exp %13 : vector<8x128xf32>
    %cst_6 = arith.constant 1.000000e+00 : f32
    %15 = vector.broadcast %cst_6 : f32 to vector<8x128xf32>
    %16 = arith.addf %15, %14 : vector<8x128xf32>
    %17 = arith.divf %15, %16 : vector<8x128xf32>
    %18 = vector.extract_strided_slice %5 {offsets = [0, 256], sizes = [8, 128], strides = [1, 1]} : vector<8x512xf32> to vector<8x128xf32>
    %19 = math.tanh %18 : vector<8x128xf32>
    %20 = vector.extract_strided_slice %5 {offsets = [0, 384], sizes = [8, 128], strides = [1, 1]} : vector<8x512xf32> to vector<8x128xf32>
    %21 = arith.negf %20 : vector<8x128xf32>
    %22 = math.exp %21 : vector<8x128xf32>
    %cst_7 = arith.constant 1.000000e+00 : f32
    %23 = vector.broadcast %cst_7 : f32 to vector<8x128xf32>
    %24 = arith.addf %23, %22 : vector<8x128xf32>
    %25 = arith.divf %23, %24 : vector<8x128xf32>
    %c0_8 = arith.constant 0 : index
    %c0_9 = arith.constant 0 : index
    %26 = vector.load %arg4[%c0_8, %c0_9] : memref<8x128xf32, #tpu.memory_space<vmem>>, vector<8x128xf32>
    %27 = arith.mulf %17, %26 : vector<8x128xf32>
    %28 = arith.mulf %11, %19 : vector<8x128xf32>
    %29 = arith.addf %27, %28 : vector<8x128xf32>
    %30 = math.tanh %29 : vector<8x128xf32>
    %31 = arith.mulf %25, %30 : vector<8x128xf32>
    %c0_10 = arith.constant 0 : index
    %c0_11 = arith.constant 0 : index
    %32 = vector.load %arg5[%c0_10, %c0_11] : memref<8x128xf32, #tpu.memory_space<vmem>>, vector<8x128xf32>
    %33 = arith.mulf %31, %32 : vector<8x128xf32>
    %c0_12 = arith.constant 0 : index
    %c0_13 = arith.constant 0 : index
    %34 = vector.load %arg6[%c0_12, %c0_13] : memref<8x128xf32, #tpu.memory_space<vmem>>, vector<8x128xf32>
    tpu.vector_store %arg6[%c0_12, %c0_13], %33 {strides = array<i32>} : memref<8x128xf32, #tpu.memory_space<vmem>>, vector<8x128xf32>,
    %c0_14 = arith.constant 0 : index
    %c0_15 = arith.constant 0 : index
    %35 = vector.load %arg7[%c0_14, %c0_15] : memref<8x128xf32, #tpu.memory_space<vmem>>, vector<8x128xf32>
    tpu.vector_store %arg7[%c0_14, %c0_15], %29 {strides = array<i32>} : memref<8x128xf32, #tpu.memory_space<vmem>>, vector<8x128xf32>,
    return
  }
  func.func @transform_0(%arg0: i32) -> (i32, i32) {
    %c0_i32 = arith.constant 0 : i32
    %c0_i32_0 = arith.constant 0 : i32
    %c0_i32_1 = arith.constant 0 : i32
    return %c0_i32, %c0_i32_0 : i32, i32
  }
  func.func @transform_1(%arg0: i32) -> (i32, i32) {
    %c0_i32 = arith.constant 0 : i32
    %c0_i32_0 = arith.constant 0 : i32
    return %c0_i32, %arg0 : i32, i32
  }
  func.func @transform_2(%arg0: i32) -> (i32, i32) {
    %c0_i32 = arith.constant 0 : i32
    %c0_i32_0 = arith.constant 0 : i32
    return %c0_i32, %arg0 : i32, i32
  }
  func.func @transform_3(%arg0: i32) -> (i32, i32) {
    %c0_i32 = arith.constant 0 : i32
    %c0_i32_0 = arith.constant 0 : i32
    return %c0_i32, %arg0 : i32, i32
  }
  func.func @transform_4(%arg0: i32) -> (i32, i32) {
    %c0_i32 = arith.constant 0 : i32
    %c0_i32_0 = arith.constant 0 : i32
    return %c0_i32, %arg0 : i32, i32
  }
  func.func @transform_5(%arg0: i32) -> (i32, i32) {
    %c0_i32 = arith.constant 0 : i32
    %c0_i32_0 = arith.constant 0 : i32
    return %c0_i32, %arg0 : i32, i32
  }
  func.func @transform_6(%arg0: i32) -> (i32, i32) {
    %c0_i32 = arith.constant 0 : i32
    %c0_i32_0 = arith.constant 0 : i32
    return %c0_i32, %arg0 : i32, i32
  }
}

</mosaic_0001>

<llo_original>
// kernel: tpu_custom_call.1
$region0: #{tpu_custom_call.1}
  #allocation0 [shape = 'u32[]', space=smem, size = 0x4, offset = 0x4, fixed_abs, tag = 'smem constant byte address 0x4 - core index']
  #allocation1 [shape = 'u32[144,128]{1,0:T(1,128)}', space=vmem, size = 0x12000, scoped, tag = 'internal scratch']
  %s0 = inlined_call_operand.hbm [shape: f32[8,160], index: 0, kind: input, shape index: {}]
  %s1 = inlined_call_operand.hbm [shape: f32[160,512], index: 1, kind: input, shape index: {}]
  %s2 = inlined_call_operand.hbm [shape: f32[1,512], index: 2, kind: input, shape index: {}]
  %s3 = inlined_call_operand.vmem [shape: f32[8,128], index: 3, kind: input, shape index: {}]
  %s4 = inlined_call_operand.hbm [shape: f32[8,128], index: 4, kind: input, shape index: {}]
  %s5 = inlined_call_operand.hbm [shape: f32[8,128], index: 5, kind: output, shape index: {0}]
  %s6 = inlined_call_operand.hbm [shape: f32[8,128], index: 6, kind: output, shape index: {1}]
  %7 = xla_tuple %s5, %s6
  %s8 = sld [smem:[#allocation0]]
  $region54: #{tpu_custom_call.1} parent=0
    _
  %s10 = ssub.s32 1, %s8
  %s11 = scalar_select 0, %s10, %s8
  $region1: #{tpu_custom_call.1} parent=0
    #allocation2 [shape = 'u8[8192]{0}', space=vmem, size = 0x2000, scoped, tag = 'input window, operand 0, single buffered']
    #allocation3 [shape = 's32[1]{0}', space=sflag, size = 0x4, scoped, tag = 'scoped memory for tpu_custom_call.1']
    #allocation4 [shape = 's32[1]{0}', space=sflag, size = 0x4, scoped, tag = 'scoped memory for tpu_custom_call.1']
    #allocation5 [shape = 'u8[327680]{0}', space=vmem, size = 0x50000, scoped, tag = 'input window, operand 1, single buffered']
    #allocation6 [shape = 's32[1]{0}', space=sflag, size = 0x4, scoped, tag = 'scoped memory for tpu_custom_call.1']
    #allocation7 [shape = 'u8[2048]{0}', space=vmem, size = 0x800, scoped, tag = 'input window, operand 2, single buffered']
    #allocation8 [shape = 'u8[4096]{0}', space=vmem, size = 0x1000, scoped, tag = 'input window, operand 4, single buffered']
    #allocation9 [shape = 's32[1]{0}', space=sflag, size = 0x4, scoped, tag = 'scoped memory for tpu_custom_call.1']
    #allocation10 [shape = 'u8[4096]{0}', space=vmem, size = 0x1000, scoped, tag = 'output window, operand 0, single buffered']
    #allocation11 [shape = 'u8[4096]{0}', space=vmem, size = 0x1000, scoped, tag = 'output window, operand 1, single buffered']
    #allocation12 [shape = 's32[1]{0}', space=sflag, size = 0x4, scoped, tag = 'scoped memory for tpu_custom_call.1']
    %12 = vsyncpa [#allocation3], 0
    %13 = vsyncpa [#allocation6], 0
    %14 = vsyncpa [#allocation9], 0
    %15 = vsyncpa [#allocation4], 0
    %16 = vsyncpa [#allocation12], 0
    // Predicated region
    $region2: #{tpu_custom_call.1} parent=1 // pred_check
      _
    $region3: #{tpu_custom_call.1} parent=1 // pred_check_branch
      %18 = sbr.rel (0) target = $region5
    $region4: #{tpu_custom_call.1} parent=1 // pred_region
      %s20 = ssub.s32 256, 256
      %21 = vsyncadd [#allocation3], %s20
      %s23 = sshll.u32 [#allocation2], 4
      %s24 = int_to_ptr.vmem [resolvable:$true] %s23
      %26 = dma.hbm_to_vmem [thread:$0]  %s0, 256, %s24, [#allocation3]
    $region5: #{tpu_custom_call.1} parent=1 // pred_fallthru
      _
    // Predicated region
    $region6: #{tpu_custom_call.1} parent=1 // pred_check
      _
    $region7: #{tpu_custom_call.1} parent=1 // pred_check_branch
      %28 = sbr.rel (0) target = $region9
    $region8: #{tpu_custom_call.1} parent=1 // pred_region
      %s30 = ssub.s32 10240, 10240
      %31 = vsyncadd [#allocation6], %s30
      %s32 = sshll.u32 [#allocation5], 4
      %s33 = int_to_ptr.vmem [resolvable:$true] %s32
      %38 = dma.hbm_to_vmem [thread:$0]  %s1, 10240, %s33, [#allocation6], 512, 512, 32
    $region9: #{tpu_custom_call.1} parent=1 // pred_fallthru
      _
    // Predicated region
    $region10: #{tpu_custom_call.1} parent=1 // pred_check
      _
    $region11: #{tpu_custom_call.1} parent=1 // pred_check_branch
      %40 = sbr.rel (0) target = $region13
    $region12: #{tpu_custom_call.1} parent=1 // pred_region
      %s42 = ssub.s32 64, 64
      %43 = vsyncadd [#allocation6], %s42
      %s45 = sshll.u32 [#allocation7], 4
      %s46 = int_to_ptr.vmem [resolvable:$true] %s45
      %48 = dma.hbm_to_vmem [thread:$0]  %s2, 64, %s46, [#allocation6]
    $region13: #{tpu_custom_call.1} parent=1 // pred_fallthru
      _
    // Predicated region
    $region14: #{tpu_custom_call.1} parent=1 // pred_check
      _
    $region15: #{tpu_custom_call.1} parent=1 // pred_check_branch
      %50 = sbr.rel (0) target = $region17
    $region16: #{tpu_custom_call.1} parent=1 // pred_region
      _
    $region17: #{tpu_custom_call.1} parent=1 // pred_fallthru
      _
    // Predicated region
    $region18: #{tpu_custom_call.1} parent=1 // pred_check
      _
    $region19: #{tpu_custom_call.1} parent=1 // pred_check_branch
      %52 = sbr.rel (0) target = $region21
    $region20: #{tpu_custom_call.1} parent=1 // pred_region
      %s54 = ssub.s32 128, 128
      %55 = vsyncadd [#allocation9], %s54
      %s57 = sshll.u32 [#allocation8], 4
      %s58 = int_to_ptr.vmem [resolvable:$true] %s57
      %60 = dma.hbm_to_vmem [thread:$0]  %s4, 128, %s58, [#allocation9]
    $region21: #{tpu_custom_call.1} parent=1 // pred_fallthru
      _
    // Predicated region
    $region22: #{tpu_custom_call.1} parent=1 // pred_check
      _
    $region23: #{tpu_custom_call.1} parent=1 // pred_check_branch
      %62 = sbr.rel (0) target = $region25
    $region24: #{tpu_custom_call.1} parent=1 // pred_region
      %63 = dma.done [#allocation3], 256
    $region25: #{tpu_custom_call.1} parent=1 // pred_fallthru
      _
    // Predicated region
    $region26: #{tpu_custom_call.1} parent=1 // pred_check
      _
    $region27: #{tpu_custom_call.1} parent=1 // pred_check_branch
      %65 = sbr.rel (0) target = $region29
    $region28: #{tpu_custom_call.1} parent=1 // pred_region
      %66 = dma.done [#allocation6], 10240
    $region29: #{tpu_custom_call.1} parent=1 // pred_fallthru
      _
    // Predicated region
    $region30: #{tpu_custom_call.1} parent=1 // pred_check
      _
    $region31: #{tpu_custom_call.1} parent=1 // pred_check_branch
      %68 = sbr.rel (0) target = $region33
    $region32: #{tpu_custom_call.1} parent=1 // pred_region
      %69 = dma.done [#allocation6], 64
    $region33: #{tpu_custom_call.1} parent=1 // pred_fallthru
      _
    // Predicated region
    $region34: #{tpu_custom_call.1} parent=1 // pred_check
      _
    $region35: #{tpu_custom_call.1} parent=1 // pred_check_branch
      %71 = sbr.rel (0) target = $region37
    $region36: #{tpu_custom_call.1} parent=1 // pred_region
      %72 = dma.done [#allocation9], 128
    $region37: #{tpu_custom_call.1} parent=1 // pred_fallthru
      _
    %v73 = vld [vmem:[#allocation2] sm:$0xff]
    %v74 = vld [vmem:[#allocation2 + $0x8] sm:$0xff]
    %v75 = vld [vmem:[#allocation5] sm:$0xff]
    %v76 = vld [vmem:[#allocation5 + $0x8] sm:$0xff]
    %v77 = vld [vmem:[#allocation5 + $0x10] sm:$0xff]
    %v78 = vld [vmem:[#allocation5 + $0x18] sm:$0xff]
    %v79 = vld [vmem:[#allocation5 + $0x20] sm:$0xff]
    %v80 = vld [vmem:[#allocation5 + $0x28] sm:$0xff]
    %v81 = vld [vmem:[#allocation5 + $0x30] sm:$0xff]
    %v82 = vld [vmem:[#allocation5 + $0x38] sm:$0xff]
    %v83 = vld [vmem:[#allocation5 + $0x40] sm:$0xff]
    %v84 = vld [vmem:[#allocation5 + $0x48] sm:$0xff]
    %v85 = vld [vmem:[#allocation5 + $0x50] sm:$0xff]
    %v86 = vld [vmem:[#allocation5 + $0x58] sm:$0xff]
    %v87 = vld [vmem:[#allocation5 + $0x60] sm:$0xff]
    %v88 = vld [vmem:[#allocation5 + $0x68] sm:$0xff]
    %v89 = vld [vmem:[#allocation5 + $0x70] sm:$0xff]
    %v90 = vld [vmem:[#allocation5 + $0x78] sm:$0xff]
    %v91 = vld [vmem:[#allocation5 + $0x80] sm:$0xff]
    %v92 = vld [vmem:[#allocation5 + $0x88] sm:$0xff]
    %v93 = vld [vmem:[#allocation5 + $0x90] sm:$0xff]
    %v94 = vld [vmem:[#allocation5 + $0x98] sm:$0xff]
    %v95 = vld [vmem:[#allocation5 + $0xa0] sm:$0xff]
    %v96 = vld [vmem:[#allocation5 + $0xa8] sm:$0xff]
    %v97 = vld [vmem:[#allocation5 + $0xb0] sm:$0xff]
    %v98 = vld [vmem:[#allocation5 + $0xb8] sm:$0xff]
    %v99 = vld [vmem:[#allocation5 + $0xc0] sm:$0xff]
    %v100 = vld [vmem:[#allocation5 + $0xc8] sm:$0xff]
    %v101 = vld [vmem:[#allocation5 + $0xd0] sm:$0xff]
    %v102 = vld [vmem:[#allocation5 + $0xd8] sm:$0xff]
    %v103 = vld [vmem:[#allocation5 + $0xe0] sm:$0xff]
    %v104 = vld [vmem:[#allocation5 + $0xe8] sm:$0xff]
    %v105 = vld [vmem:[#allocation5 + $0xf0] sm:$0xff]
    %v106 = vld [vmem:[#allocation5 + $0xf8] sm:$0xff]
    %v107 = vld [vmem:[#allocation5 + $0x100] sm:$0xff]
    %v108 = vld [vmem:[#allocation5 + $0x108] sm:$0xff]
    %v109 = vld [vmem:[#allocation5 + $0x110] sm:$0xff]
    %v110 = vld [vmem:[#allocation5 + $0x118] sm:$0xff]
    %v111 = vld [vmem:[#allocation5 + $0x120] sm:$0xff]
    %v112 = vld [vmem:[#allocation5 + $0x128] sm:$0xff]
    %v113 = vld [vmem:[#allocation5 + $0x130] sm:$0xff]
    %v114 = vld [vmem:[#allocation5 + $0x138] sm:$0xff]
    %v115 = vld [vmem:[#allocation5 + $0x140] sm:$0xff]
    %v116 = vld [vmem:[#allocation5 + $0x148] sm:$0xff]
    %v117 = vld [vmem:[#allocation5 + $0x150] sm:$0xff]
    %v118 = vld [vmem:[#allocation5 + $0x158] sm:$0xff]
    %v119 = vld [vmem:[#allocation5 + $0x160] sm:$0xff]
    %v120 = vld [vmem:[#allocation5 + $0x168] sm:$0xff]
    %v121 = vld [vmem:[#allocation5 + $0x170] sm:$0xff]
    %v122 = vld [vmem:[#allocation5 + $0x178] sm:$0xff]
    %v123 = vld [vmem:[#allocation5 + $0x180] sm:$0xff]
    %v124 = vld [vmem:[#allocation5 + $0x188] sm:$0xff]
    %v125 = vld [vmem:[#allocation5 + $0x190] sm:$0xff]
    %v126 = vld [vmem:[#allocation5 + $0x198] sm:$0xff]
    %v127 = vld [vmem:[#allocation5 + $0x1a0] sm:$0xff]
    %v128 = vld [vmem:[#allocation5 + $0x1a8] sm:$0xff]
    %v129 = vld [vmem:[#allocation5 + $0x1b0] sm:$0xff]
    %v130 = vld [vmem:[#allocation5 + $0x1b8] sm:$0xff]
    %v131 = vld [vmem:[#allocation5 + $0x1c0] sm:$0xff]
    %v132 = vld [vmem:[#allocation5 + $0x1c8] sm:$0xff]
    %v133 = vld [vmem:[#allocation5 + $0x1d0] sm:$0xff]
    %v134 = vld [vmem:[#allocation5 + $0x1d8] sm:$0xff]
    %v135 = vld [vmem:[#allocation5 + $0x1e0] sm:$0xff]
    %v136 = vld [vmem:[#allocation5 + $0x1e8] sm:$0xff]
    %v137 = vld [vmem:[#allocation5 + $0x1f0] sm:$0xff]
    %v138 = vld [vmem:[#allocation5 + $0x1f8] sm:$0xff]
    %v139 = vld [vmem:[#allocation5 + $0x200] sm:$0xff]
    %v140 = vld [vmem:[#allocation5 + $0x208] sm:$0xff]
    %v141 = vld [vmem:[#allocation5 + $0x210] sm:$0xff]
    %v142 = vld [vmem:[#allocation5 + $0x218] sm:$0xff]
    %v143 = vld [vmem:[#allocation5 + $0x220] sm:$0xff]
    %v144 = vld [vmem:[#allocation5 + $0x228] sm:$0xff]
    %v145 = vld [vmem:[#allocation5 + $0x230] sm:$0xff]
    %v146 = vld [vmem:[#allocation5 + $0x238] sm:$0xff]
    %v147 = vld [vmem:[#allocation5 + $0x240] sm:$0xff]
    %v148 = vld [vmem:[#allocation5 + $0x248] sm:$0xff]
    %v149 = vld [vmem:[#allocation5 + $0x250] sm:$0xff]
    %v150 = vld [vmem:[#allocation5 + $0x258] sm:$0xff]
    %v151 = vld [vmem:[#allocation5 + $0x260] sm:$0xff]
    %v152 = vld [vmem:[#allocation5 + $0x268] sm:$0xff]
    %v153 = vld [vmem:[#allocation5 + $0x270] sm:$0xff]
    %v154 = vld [vmem:[#allocation5 + $0x278] sm:$0xff]
    %v155 = vld [vmem:[#allocation7] sm:$0xf]
    %v157 = vlaneseq
    %v158 = vshrl.u32 %v157, 7
    %v159 = vsub.s32 0, %v158
    %v160 = vrot.slane %v155, %v159
    %v161 = vlaneseq
    %v162 = vshrl.u32 %v161, 7
    %v163 = vsub.s32 1, %v162
    %v164 = vrot.slane %v155, %v163
    %v165 = vlaneseq
    %v166 = vshrl.u32 %v165, 7
    %v167 = vsub.s32 2, %v166
    %v168 = vrot.slane %v155, %v167
    %v169 = vlaneseq
    %v170 = vshrl.u32 %v169, 7
    %v171 = vsub.s32 3, %v170
    %v172 = vrot.slane %v155, %v171
    %vm177 = vcmask 261120
    %v179 = vsel %vm177, %v74, 0
    %181 = vmatprep.subr.mxu0 %v76
    %182 = vmatpush1.msra.mxu0 %v75
    %183 = vmatprep.subr.mxu0 %v80
    %184 = vmatpush1.msra.mxu0 %v79
    %185 = vmatprep.subr.mxu0 %v84
    %186 = vmatpush1.msra.mxu0 %v83
    %187 = vmatprep.subr.mxu0 %v88
    %188 = vmatpush1.msra.mxu0 %v87
    %189 = vmatprep.subr.mxu0 %v92
    %190 = vmatpush1.msra.mxu0 %v91
    %191 = vmatprep.subr.mxu0 %v96
    %192 = vmatpush1.msra.mxu0 %v95
    %193 = vmatprep.subr.mxu0 %v100
    %194 = vmatpush1.msra.mxu0 %v99
    %195 = vmatprep.subr.mxu0 %v104
    %196 = vmatpush1.msra.mxu0 %v103
    %197 = vmatprep.subr.mxu0 %v108
    %198 = vmatpush1.msra.mxu0 %v107
    %199 = vmatprep.subr.mxu0 %v112
    %200 = vmatpush1.msra.mxu0 %v111
    %201 = vmatprep.subr.mxu0 %v116
    %202 = vmatpush1.msra.mxu0 %v115
    %203 = vmatprep.subr.mxu0 %v120
    %204 = vmatpush1.msra.mxu0 %v119
    %205 = vmatprep.subr.mxu0 %v124
    %206 = vmatpush1.msra.mxu0 %v123
    %207 = vmatprep.subr.mxu0 %v128
    %208 = vmatpush1.msra.mxu0 %v127
    %209 = vmatprep.subr.mxu0 %v132
    %210 = vmatpush1.msra.mxu0 %v131
    %211 = vmatprep.subr.mxu0 %v136
    %212 = vmatpush1.msra.mxu0 %v135
    %213 = vmatprep.subr.mxu0 %v140
    %214 = vmatpush1.msra.mxu0 %v139
    %215 = vmatprep.subr.mxu0 %v144
    %216 = vmatpush1.msra.mxu0 %v143
    %217 = vmatprep.subr.mxu0 %v148
    %218 = vmatpush1.msra.mxu0 %v147
    %219 = vmatprep.subr.mxu0 %v152
    %220 = vmatpush1.msra.mxu0 %v151
    %221 = vmatprep.subr.mxu0 0.0
    %222 = vmatpush1.msra.mxu0 0.0
    %223 = vmatprep.subr.mxu0 0.0
    %224 = vmatpush1.msra.mxu0 0.0
    %225 = vmatprep.subr.mxu0 0.0
    %226 = vmatpush1.msra.mxu0 0.0
    %227 = vmatprep.subr.mxu0 0.0
    %228 = vmatpush1.msra.mxu0 0.0
    %229 = vmatprep.subr.mxu0 0.0
    %230 = vmatpush1.msra.mxu0 0.0
    %231 = vmatprep.subr.mxu0 0.0
    %232 = vmatpush1.msra.mxu0 0.0
    %233 = vmatprep.subr.mxu0 0.0
    %234 = vmatpush1.msra.mxu0 0.0
    %235 = vmatprep.subr.mxu0 0.0
    %236 = vmatpush1.msra.mxu0 0.0
    %237 = vmatprep.subr.mxu0 0.0
    %238 = vmatpush1.msra.mxu0 0.0
    %239 = vmatprep.subr.mxu0 0.0
    %240 = vmatpush1.msra.mxu0 0.0
    %241 = vmatprep.subr.mxu0 0.0
    %242 = vmatpush1.msra.mxu0 0.0
    %243 = vmatprep.subr.mxu0 0.0
    %244 = vmatpush1.msra.mxu0 0.0
    %245 = vmatprep.mubr.f32.mxu0 %v179
    %246 = vmatmul.mubr.f32.gmra.mrb[0].mxu0 %v73
    %v247 = vpop.f32.mrb[0].mxu0
    %v248 = vadd.f32 %v160, %v247
    %v249 = vpop.f32.mrb[0].mxu0
    %v250 = vadd.f32 %v164, %v249
    %251 = vdwg.mxu0
    %252 = vmatprep.subr.mxu0 %v78
    %253 = vmatpush1.msra.mxu0 %v77
    %254 = vmatprep.subr.mxu0 %v82
    %255 = vmatpush1.msra.mxu0 %v81
    %256 = vmatprep.subr.mxu0 %v86
    %257 = vmatpush1.msra.mxu0 %v85
    %258 = vmatprep.subr.mxu0 %v90
    %259 = vmatpush1.msra.mxu0 %v89
    %260 = vmatprep.subr.mxu0 %v94
    %261 = vmatpush1.msra.mxu0 %v93
    %262 = vmatprep.subr.mxu0 %v98
    %263 = vmatpush1.msra.mxu0 %v97
    %264 = vmatprep.subr.mxu0 %v102
    %265 = vmatpush1.msra.mxu0 %v101
    %266 = vmatprep.subr.mxu0 %v106
    %267 = vmatpush1.msra.mxu0 %v105
    %268 = vmatprep.subr.mxu0 %v110
    %269 = vmatpush1.msra.mxu0 %v109
    %270 = vmatprep.subr.mxu0 %v114
    %271 = vmatpush1.msra.mxu0 %v113
    %272 = vmatprep.subr.mxu0 %v118
    %273 = vmatpush1.msra.mxu0 %v117
    %274 = vmatprep.subr.mxu0 %v122
    %275 = vmatpush1.msra.mxu0 %v121
    %276 = vmatprep.subr.mxu0 %v126
    %277 = vmatpush1.msra.mxu0 %v125
    %278 = vmatprep.subr.mxu0 %v130
    %279 = vmatpush1.msra.mxu0 %v129
    %280 = vmatprep.subr.mxu0 %v134
    %281 = vmatpush1.msra.mxu0 %v133
    %282 = vmatprep.subr.mxu0 %v138
    %283 = vmatpush1.msra.mxu0 %v137
    %284 = vmatprep.subr.mxu0 %v142
    %285 = vmatpush1.msra.mxu0 %v141
    %286 = vmatprep.subr.mxu0 %v146
    %287 = vmatpush1.msra.mxu0 %v145
    %288 = vmatprep.subr.mxu0 %v150
    %289 = vmatpush1.msra.mxu0 %v149
    %290 = vmatprep.subr.mxu0 %v154
    %291 = vmatpush1.msra.mxu0 %v153
    %292 = vmatprep.subr.mxu0 0.0
    %293 = vmatpush1.msra.mxu0 0.0
    %294 = vmatprep.subr.mxu0 0.0
    %295 = vmatpush1.msra.mxu0 0.0
    %296 = vmatprep.subr.mxu0 0.0
    %297 = vmatpush1.msra.mxu0 0.0
    %298 = vmatprep.subr.mxu0 0.0
    %299 = vmatpush1.msra.mxu0 0.0
    %300 = vmatprep.subr.mxu0 0.0
    %301 = vmatpush1.msra.mxu0 0.0
    %302 = vmatprep.subr.mxu0 0.0
    %303 = vmatpush1.msra.mxu0 0.0
    %304 = vmatprep.subr.mxu0 0.0
    %305 = vmatpush1.msra.mxu0 0.0
    %306 = vmatprep.subr.mxu0 0.0
    %307 = vmatpush1.msra.mxu0 0.0
    %308 = vmatprep.subr.mxu0 0.0
    %309 = vmatpush1.msra.mxu0 0.0
    %310 = vmatprep.subr.mxu0 0.0
    %311 = vmatpush1.msra.mxu0 0.0
    %312 = vmatprep.subr.mxu0 0.0
    %313 = vmatpush1.msra.mxu0 0.0
    %314 = vmatprep.subr.mxu0 0.0
    %315 = vmatpush1.msra.mxu0 0.0
    %316 = vmatprep.mubr.f32.mxu0 %v179
    %317 = vmatmul.mubr.f32.gmra.mrb[0].mxu0 %v73
    %v318 = vpop.f32.mrb[0].mxu0
    %v319 = vadd.f32 %v168, %v318
    %v320 = vpop.f32.mrb[0].mxu0
    %v321 = vadd.f32 %v172, %v320
    %322 = vdwg.mxu0
    %v323 = vxor.u32 %v248, 2147483648
    %v324 = vmul.f32 %v323, 1.442695
    %v325 = vpow.pop %v324
    %v326 = vadd.f32 %v325, 1.0
    %v327 = vrcp.pop %v326
    %v328 = vmul.f32 1.0, %v327
    %v329 = vxor.u32 %v250, 2147483648
    %v330 = vmul.f32 %v329, 1.442695
    %v331 = vpow.pop %v330
    %v332 = vadd.f32 %v331, 1.0
    %v333 = vrcp.pop %v332
    %v334 = vmul.f32 1.0, %v333
    %v335 = vtanh.pop %v319
    %v336 = vxor.u32 %v321, 2147483648
    %v337 = vmul.f32 %v336, 1.442695
    %v338 = vpow.pop %v337
    %v339 = vadd.f32 %v338, 1.0
    %v340 = vrcp.pop %v339
    %v341 = vmul.f32 1.0, %v340
    %v342 = vld [vmem:[%s3] sm:$0xff]
    %v343 = vmul.f32 %v334, %v342
    %v344 = vmul.f32 %v328, %v335
    %v345 = vadd.f32 %v343, %v344
    %v346 = vtanh.pop %v345
    %v347 = vmul.f32 %v341, %v346
    %v348 = vld [vmem:[#allocation8] sm:$0xff]
    %v349 = vmul.f32 %v347, %v348
    %350 = vst [vmem:[#allocation10] sm:$0xff] %v349
    %351 = vst [vmem:[#allocation11] sm:$0xff] %v345
    // Predicated region
    $region38: #{tpu_custom_call.1} parent=1 // pred_check
      _
    $region39: #{tpu_custom_call.1} parent=1 // pred_check_branch
      %353 = sbr.rel (0) target = $region41
    $region40: #{tpu_custom_call.1} parent=1 // pred_region
      %s355 = ssub.s32 128, 128
      %356 = vsyncadd [#allocation4], %s355
      %s358 = sshll.u32 [#allocation10], 4
      %s359 = int_to_ptr.vmem [resolvable:$true] %s358
      %361 = dma.vmem_to_hbm [thread:$0]  %s359, 128, %s5, [#allocation4]
    $region41: #{tpu_custom_call.1} parent=1 // pred_fallthru
      _
    // Predicated region
    $region42: #{tpu_custom_call.1} parent=1 // pred_check
      _
    $region43: #{tpu_custom_call.1} parent=1 // pred_check_branch
      %363 = sbr.rel (0) target = $region45
    $region44: #{tpu_custom_call.1} parent=1 // pred_region
      %s365 = ssub.s32 128, 128
      %366 = vsyncadd [#allocation12], %s365
      %s368 = sshll.u32 [#allocation11], 4
      %s369 = int_to_ptr.vmem [resolvable:$true] %s368
      %371 = dma.vmem_to_hbm [thread:$0]  %s369, 128, %s6, [#allocation12]
    $region45: #{tpu_custom_call.1} parent=1 // pred_fallthru
      _
    // Predicated region
    $region46: #{tpu_custom_call.1} parent=1 // pred_check
      _
    $region47: #{tpu_custom_call.1} parent=1 // pred_check_branch
      %373 = sbr.rel (0) target = $region49
    $region48: #{tpu_custom_call.1} parent=1 // pred_region
      %374 = dma.done [#allocation4], 128
    $region49: #{tpu_custom_call.1} parent=1 // pred_fallthru
      _
    // Predicated region
    $region50: #{tpu_custom_call.1} parent=1 // pred_check
      _
    $region51: #{tpu_custom_call.1} parent=1 // pred_check_branch
      %376 = sbr.rel (0) target = $region53
    $region52: #{tpu_custom_call.1} parent=1 // pred_region
      %377 = dma.done [#allocation12], 128
    $region53: #{tpu_custom_call.1} parent=1 // pred_fallthru
      _
    %378 = vsyncpa [#allocation3], 1
    %379 = vsyncpa [#allocation6], 1
    %380 = vsyncpa [#allocation9], 1
    %381 = vsyncpa [#allocation4], 1
    %382 = vsyncpa [#allocation12], 1

</llo_original>
